<compile_context>
chip_gen: v7x
topology: tpu7x:2x2x1
jax: 0.10.0
libtpu: 0.0.40
codegen_flags: <defaults>
</compile_context>

<pallas_src>
import jax
import jax.numpy as jnp
from jax.experimental import pallas as pl
from jax.experimental.pallas import tpu as pltpu


def _round_up(a, b):
    return (a + b - 1) // b * b


def _row_align(dtype):
    # Sublane packing granularity: 8 rows for 32-bit, 16 for 16-bit, 32 for 8-bit.
    return {4: 8, 2: 16, 1: 32}.get(jnp.dtype(dtype).itemsize, 8)


def _ce_single_kernel(x_ref, y_ref, out_ref):
    """Single class-tile path: plain log-softmax CE, no scratch."""
    x = x_ref[...].astype(jnp.float32)          # (block_rows, C)
    y = y_ref[...].astype(jnp.float32)
    m = jnp.max(x, axis=-1, keepdims=True)      # (block_rows, 1)
    lse = m + jnp.log(jnp.sum(jnp.exp(x - m), axis=-1, keepdims=True))
    loss = (lse * jnp.sum(y, axis=-1, keepdims=True)
            - jnp.sum(y * x, axis=-1, keepdims=True))
    # Lane-dense store: per-row losses laid out along the lane axis.
    out_ref[...] = loss.reshape(1, loss.shape[0])


def _ce_online_kernel(x_ref, y_ref, out_ref, m_ref, l_ref, dot_ref, ysum_ref):
    """Online soft-target cross-entropy over class tiles.

    Accumulators (block_rows, 1) persist in VMEM scratch across the class axis:
      m    = running row max of logits
      l    = running sum exp(x - m)
      dot  = running sum y * x
      ysum = running sum y
    loss_row = (m + log l) * ysum - dot
    """
    k = pl.program_id(1)

    @pl.when(k == 0)
    def _init():
        m_ref[...] = jnp.full(m_ref.shape, -jnp.inf, dtype=jnp.float32)
        l_ref[...] = jnp.zeros(l_ref.shape, dtype=jnp.float32)
        dot_ref[...] = jnp.zeros(dot_ref.shape, dtype=jnp.float32)
        ysum_ref[...] = jnp.zeros(ysum_ref.shape, dtype=jnp.float32)

    # Stream in storage dtype (bf16 stays bf16 in HBM); upcast in VMEM.
    x = x_ref[...].astype(jnp.float32)          # (block_rows, class_block)
    y = y_ref[...].astype(jnp.float32)

    m_prev = m_ref[...]                                         # (block_rows, 1)
    m_new = jnp.maximum(m_prev, jnp.max(x, axis=-1, keepdims=True))
    alpha = jnp.exp(m_prev - m_new)
    l_ref[...] = alpha * l_ref[...] + jnp.sum(jnp.exp(x - m_new),
                                              axis=-1, keepdims=True)
    m_ref[...] = m_new
    dot_ref[...] += jnp.sum(y * x, axis=-1, keepdims=True)
    ysum_ref[...] += jnp.sum(y, axis=-1, keepdims=True)

    @pl.when(k == pl.num_programs(1) - 1)
    def _finalize():
        lse = m_ref[...] + jnp.log(l_ref[...])                  # (block_rows, 1)
        loss = lse * ysum_ref[...] - dot_ref[...]               # (block_rows, 1)
        out_ref[...] = loss.reshape(1, loss.shape[0])


def soft_target_cross_entropy(x, y, reduction="mean", *,
                              block_rows=None, class_block=None):
    """Pallas implementation of SoftTargetCrossEntropy.forward(x, y)."""
    assert x.shape == y.shape, "logits and soft targets must match in shape"
    orig_batch_shape = x.shape[:-1]
    C = x.shape[-1]
    x2 = x.reshape(-1, C)
    y2 = y.reshape(-1, C)
    N = x2.shape[0]

    row_align = max(_row_align(x2.dtype), _row_align(y2.dtype))

    # VMEM budget for the pipelined input buffers: 2 arrays x 2 buffers.
    # <= 16 MiB of inputs + scratch fits comfortably under the 32 MiB scoped
    # limit below on every generation (v5e/v6e 128 MiB, v7x 64 MiB physical).
    input_budget = 16 * 1024 * 1024
    bytes_per_pair = jnp.dtype(x2.dtype).itemsize + jnp.dtype(y2.dtype).itemsize
    max_tile_elems = input_budget // (2 * bytes_per_pair)

    # --- class tile: full C when it fits, else a 128-multiple tile ---
    if class_block is None:
        min_rows = 4 * row_align
        if C * min_rows <= max_tile_elems:
            class_block = C
        else:
            class_block = max(128, (max_tile_elems // min_rows) // 128 * 128)
            class_block = min(class_block, _round_up(C, 128))
    if class_block >= C:
        class_block = C
    else:
        class_block = _round_up(class_block, 128)
    C_pad = C if class_block == C else _round_up(C, class_block)

    # --- row tile: as large as the budget allows, capped at 1024 and at N ---
    if block_rows is None:
        fit_rows = max(row_align,
                       (max_tile_elems // class_block) // row_align * row_align)
        block_rows = min(1024, fit_rows)
    block_rows = _round_up(block_rows, row_align)
    block_rows = min(block_rows, _round_up(N, row_align))
    N_pad = _round_up(N, block_rows)

    # Pad remainders: logits with a large finite negative (zero softmax weight,
    # no inf-inf NaNs), targets with 0 (padded rows/classes contribute exactly 0).
    if N_pad != N or C_pad != C:
        neg_fill = float(jnp.finfo(x2.dtype).min) / 2
        x2 = jnp.pad(x2, ((0, N_pad - N), (0, C_pad - C)), constant_values=neg_fill)
        y2 = jnp.pad(y2, ((0, N_pad - N), (0, C_pad - C)), constant_values=0)

    num_row_blocks = N_pad // block_rows
    num_class_blocks = C_pad // class_block

    out_shape = jax.ShapeDtypeStruct((num_row_blocks, block_rows), jnp.float32)
    compiler_params_1d = pltpu.CompilerParams(
        dimension_semantics=("parallel",),
        vmem_limit_bytes=32 * 1024 * 1024,
    )
    compiler_params_2d = pltpu.CompilerParams(
        dimension_semantics=("parallel", "arbitrary"),
        vmem_limit_bytes=32 * 1024 * 1024,
    )

    if num_class_blocks == 1:
        # Fast path: whole class dim in one tile, single-pass, no scratch.
        out = pl.pallas_call(
            _ce_single_kernel,
            out_shape=out_shape,
            grid_spec=pltpu.PrefetchScalarGridSpec(
                num_scalar_prefetch=0,
                grid=(num_row_blocks,),
                in_specs=[
                    pl.BlockSpec((block_rows, class_block), lambda i: (i, 0)),
                    pl.BlockSpec((block_rows, class_block), lambda i: (i, 0)),
                ],
                out_specs=pl.BlockSpec((1, block_rows), lambda i: (i, 0)),
            ),
            compiler_params=compiler_params_1d,
        )(x2, y2)
    else:
        out = pl.pallas_call(
            _ce_online_kernel,
            out_shape=out_shape,
            grid_spec=pltpu.PrefetchScalarGridSpec(
                num_scalar_prefetch=0,
                grid=(num_row_blocks, num_class_blocks),
                in_specs=[
                    pl.BlockSpec((block_rows, class_block), lambda i, k: (i, k)),
                    pl.BlockSpec((block_rows, class_block), lambda i, k: (i, k)),
                ],
                # Same output block across the class axis -> resident in VMEM,
                # written once at the last class step; lane-dense last dim.
                out_specs=pl.BlockSpec((1, block_rows), lambda i, k: (i, 0)),
                scratch_shapes=[pltpu.VMEM((block_rows, 1), jnp.float32)] * 4,
            ),
            compiler_params=compiler_params_2d,
        )(x2, y2)

    if reduction == "mean":
        # Padded rows are exactly 0, so sum over everything; divide by true N.
        return jnp.sum(out) / N
    elif reduction == "none":
        return out.reshape(-1)[:N].reshape(orig_batch_shape)
    else:
        raise NotImplementedError(reduction)


def _reference(x, y, reduction="mean"):
    logp = jax.nn.log_softmax(x.astype(jnp.float32), axis=-1)
    loss = jnp.sum(-y.astype(jnp.float32) * logp, axis=-1)
    return jnp.mean(loss) if reduction == "mean" else loss


if __name__ == "__main__":
    key = jax.random.PRNGKey(0)
    k1, k2, k3, k4, k5, k6 = jax.random.split(key, 6)

    def check(x, y, **kw):
        for red in ("mean", "none"):
            got = soft_target_cross_entropy(x, y, reduction=red, **kw)
            got = jax.block_until_ready(got)
            want = _reference(x, y, red)
            assert got.shape == want.shape, (red, got.shape, want.shape)
            assert jnp.allclose(got, want, rtol=1e-4, atol=1e-4), (red, got, want)

    # 1) batch=2, seq=8, classes=128, f32 (single class tile -> fast path).
    x = jax.random.normal(k1, (2, 8, 128), dtype=jnp.float32)
    y = jax.nn.softmax(jax.random.normal(k2, (2, 8, 128), dtype=jnp.float32), axis=-1)
    check(x, y)

    # 2) Ragged rows + forced class tiling: exercises row padding, class padding
    #    and the multi-step online-LSE path.
    x = jax.random.normal(k3, (10, 200), dtype=jnp.float32)
    y = jax.nn.softmax(jax.random.normal(k4, (10, 200), dtype=jnp.float32), axis=-1)
    check(x, y, class_block=128)

    # 3) bf16 storage dtype streamed directly; upcast happens inside VMEM.
    x = jax.random.normal(k5, (16, 128), dtype=jnp.bfloat16)
    y = jax.nn.softmax(jax.random.normal(k6, (16, 128), dtype=jnp.float32),
                       axis=-1).astype(jnp.bfloat16)
    check(x, y)

    print("KERNEL_OK")
</pallas_src>

<mosaic_0001>
module attributes {stable_mosaic.version = 11 : i64} {
  func.func @_ce_single_kernel(%arg0: i32, %arg1: memref<16x128xf32, #tpu.memory_space<vmem>>, %arg2: memref<16x128xf32, #tpu.memory_space<vmem>>, %arg3: memref<1x16xf32, #tpu.memory_space<vmem>>) attributes {dimension_semantics = [#tpu.dimension_semantics<parallel>], iteration_bounds = array<i64: 1>, scalar_prefetch = 0 : i64, scratch_operands = 0 : i64, tpu.core_type = #tpu.core_type<tc>, window_params = [{transform_indices = @transform_0, window_bounds = array<i64: 16, 128>}, {transform_indices = @transform_1, window_bounds = array<i64: 16, 128>}, {transform_indices = @transform_2, window_bounds = array<i64: 1, 16>}]} {
    %c0 = arith.constant 0 : index
    %c0_0 = arith.constant 0 : index
    %0 = vector.load %arg1[%c0, %c0_0] : memref<16x128xf32, #tpu.memory_space<vmem>>, vector<16x128xf32>
    %c0_1 = arith.constant 0 : index
    %c0_2 = arith.constant 0 : index
    %1 = vector.load %arg2[%c0_1, %c0_2] : memref<16x128xf32, #tpu.memory_space<vmem>>, vector<16x128xf32>
    %cst = arith.constant dense<0xFF800000> : vector<16xf32>
    %2 = vector.multi_reduction <maximumf>, %0, %cst [1] : vector<16x128xf32> to vector<16xf32>
    %3 = vector.shape_cast %2 : vector<16xf32> to vector<16x1xf32>
    %4 = vector.broadcast %3 : vector<16x1xf32> to vector<16x128xf32>
    %5 = arith.subf %0, %4 : vector<16x128xf32>
    %6 = math.exp %5 : vector<16x128xf32>
    %cst_3 = arith.constant dense<0.000000e+00> : vector<16xf32>
    %7 = vector.multi_reduction <add>, %6, %cst_3 [1] : vector<16x128xf32> to vector<16xf32>
    %8 = vector.shape_cast %7 : vector<16xf32> to vector<16x1xf32>
    %9 = math.log %8 : vector<16x1xf32>
    %10 = arith.addf %3, %9 : vector<16x1xf32>
    %cst_4 = arith.constant dense<0.000000e+00> : vector<16xf32>
    %11 = vector.multi_reduction <add>, %1, %cst_4 [1] : vector<16x128xf32> to vector<16xf32>
    %12 = vector.shape_cast %11 : vector<16xf32> to vector<16x1xf32>
    %13 = arith.mulf %10, %12 : vector<16x1xf32>
    %14 = arith.mulf %1, %0 : vector<16x128xf32>
    %cst_5 = arith.constant dense<0.000000e+00> : vector<16xf32>
    %15 = vector.multi_reduction <add>, %14, %cst_5 [1] : vector<16x128xf32> to vector<16xf32>
    %16 = vector.shape_cast %15 : vector<16xf32> to vector<16x1xf32>
    %17 = arith.subf %13, %16 : vector<16x1xf32>
    %18 = vector.shape_cast %17 : vector<16x1xf32> to vector<1x16xf32>
    %c0_6 = arith.constant 0 : index
    %c0_7 = arith.constant 0 : index
    %19 = vector.load %arg3[%c0_6, %c0_7] : memref<1x16xf32, #tpu.memory_space<vmem>>, vector<1x16xf32>
    tpu.vector_store %arg3[%c0_6, %c0_7], %18 {strides = array<i32>} : memref<1x16xf32, #tpu.memory_space<vmem>>, vector<1x16xf32>,
    return
  }
  func.func @transform_0(%arg0: i32) -> (i32, i32) {
    %c0_i32 = arith.constant 0 : i32
    %c0_i32_0 = arith.constant 0 : i32
    return %arg0, %c0_i32 : i32, i32
  }
  func.func @transform_1(%arg0: i32) -> (i32, i32) {
    %c0_i32 = arith.constant 0 : i32
    %c0_i32_0 = arith.constant 0 : i32
    return %arg0, %c0_i32 : i32, i32
  }
  func.func @transform_2(%arg0: i32) -> (i32, i32) {
    %c0_i32 = arith.constant 0 : i32
    %c0_i32_0 = arith.constant 0 : i32
    return %arg0, %c0_i32 : i32, i32
  }
}

</mosaic_0001>

<llo_original>
// kernel: tpu_custom_call.1
$region0: #{tpu_custom_call.1}
  #allocation0 [shape = 'u32[]', space=smem, size = 0x4, offset = 0x4, fixed_abs, tag = 'smem constant byte address 0x4 - core index']
  #allocation1 [shape = 'u32[144,128]{1,0:T(1,128)}', space=vmem, size = 0x12000, scoped, tag = 'internal scratch']
  %s0 = inlined_call_operand.hbm [shape: f32[16,128], index: 0, kind: input, shape index: {}]
  %s1 = inlined_call_operand.hbm [shape: f32[16,128], index: 1, kind: input, shape index: {}]
  %s2 = inlined_call_operand.hbm [shape: f32[1,16], index: 2, kind: output, shape index: {}]
  %s3 = sld [smem:[#allocation0]]
  $region26: #{tpu_custom_call.1} parent=0
    _
  %s5 = ssub.s32 1, %s3
  %s6 = scalar_select 0, %s5, %s3
  $region1: #{tpu_custom_call.1} parent=0
    #allocation2 [shape = 'u8[8192]{0}', space=vmem, size = 0x2000, scoped, tag = 'input window, operand 0, single buffered']
    #allocation3 [shape = 's32[1]{0}', space=sflag, size = 0x4, scoped, tag = 'scoped memory for tpu_custom_call.1']
    #allocation4 [shape = 's32[1]{0}', space=sflag, size = 0x4, scoped, tag = 'scoped memory for tpu_custom_call.1']
    #allocation5 [shape = 'u8[8192]{0}', space=vmem, size = 0x2000, scoped, tag = 'input window, operand 1, single buffered']
    #allocation6 [shape = 's32[1]{0}', space=sflag, size = 0x4, scoped, tag = 'scoped memory for tpu_custom_call.1']
    #allocation7 [shape = 'u8[512]{0}', space=vmem, size = 0x400, scoped, tag = 'output window, operand 0, single buffered']
    %7 = vsyncpa [#allocation3], 0
    %8 = vsyncpa [#allocation6], 0
    %9 = vsyncpa [#allocation4], 0
    // Predicated region
    $region2: #{tpu_custom_call.1} parent=1 // pred_check
      _
    $region3: #{tpu_custom_call.1} parent=1 // pred_check_branch
      %11 = sbr.rel (0) target = $region5
    $region4: #{tpu_custom_call.1} parent=1 // pred_region
      %s13 = ssub.s32 256, 256
      %14 = vsyncadd [#allocation3], %s13
      %s15 = sshll.u32 [#allocation2], 4
      %s16 = int_to_ptr.vmem [resolvable:$true] %s15
      %21 = dma.hbm_to_vmem [thread:$0]  %s0, 256, %s16, [#allocation3], 128, 128, 8
    $region5: #{tpu_custom_call.1} parent=1 // pred_fallthru
      _
    // Predicated region
    $region6: #{tpu_custom_call.1} parent=1 // pred_check
      _
    $region7: #{tpu_custom_call.1} parent=1 // pred_check_branch
      %23 = sbr.rel (0) target = $region9
    $region8: #{tpu_custom_call.1} parent=1 // pred_region
      %s25 = ssub.s32 256, 256
      %26 = vsyncadd [#allocation6], %s25
      %s27 = sshll.u32 [#allocation5], 4
      %s28 = int_to_ptr.vmem [resolvable:$true] %s27
      %33 = dma.hbm_to_vmem [thread:$0]  %s1, 256, %s28, [#allocation6], 128, 128, 8
    $region9: #{tpu_custom_call.1} parent=1 // pred_fallthru
      _
    // Predicated region
    $region10: #{tpu_custom_call.1} parent=1 // pred_check
      _
    $region11: #{tpu_custom_call.1} parent=1 // pred_check_branch
      %35 = sbr.rel (0) target = $region13
    $region12: #{tpu_custom_call.1} parent=1 // pred_region
      %36 = dma.done [#allocation3], 256
    $region13: #{tpu_custom_call.1} parent=1 // pred_fallthru
      _
    // Predicated region
    $region14: #{tpu_custom_call.1} parent=1 // pred_check
      _
    $region15: #{tpu_custom_call.1} parent=1 // pred_check_branch
      %38 = sbr.rel (0) target = $region17
    $region16: #{tpu_custom_call.1} parent=1 // pred_region
      %39 = dma.done [#allocation6], 256
    $region17: #{tpu_custom_call.1} parent=1 // pred_fallthru
      _
    %v40 = vld [vmem:[#allocation2] sm:$0xff]
    %v41 = vld [vmem:[#allocation2 + $0x8] sm:$0xff]
    %v42 = vld [vmem:[#allocation5] sm:$0xff]
    %v43 = vld [vmem:[#allocation5 + $0x8] sm:$0xff]
    %44 = vmax.xlane.f32.xlu0 %v40
    %v45 = vpop.xlane.xlu0 %44
    %46 = vmax.xlane.f32.xlu0 %v41
    %v47 = vpop.xlane.xlu0 %46
    %v48 = vsub.f32 %v40, %v45
    %v49 = vsub.f32 %v41, %v47
    %v50 = vmul.f32 %v48, 1.442695
    %v51 = vpow.pop %v50
    %v52 = vmul.f32 %v49, 1.442695
    %v53 = vpow.pop %v52
    %54 = vadd.xlane.f32.xlu0 %v51
    %v55 = vpop.xlane.xlu0 %54
    %56 = vadd.xlane.f32.xlu0 %v53
    %v57 = vpop.xlane.xlu0 %56
    %v58 = vlog2.pop %v55
    %v59 = vmul.f32 %v58, 0.6931472
    %v60 = vlog2.pop %v57
    %v61 = vmul.f32 %v60, 0.6931472
    %v62 = vadd.f32 %v45, %v59
    %v63 = vadd.f32 %v47, %v61
    %64 = vadd.xlane.f32.xlu0 %v42
    %v65 = vpop.xlane.xlu0 %64
    %66 = vadd.xlane.f32.xlu0 %v43
    %v67 = vpop.xlane.xlu0 %66
    %v68 = vmul.f32 %v62, %v65
    %v69 = vmul.f32 %v63, %v67
    %v70 = vmul.f32 %v42, %v40
    %v71 = vmul.f32 %v43, %v41
    %72 = vadd.xlane.f32.xlu0 %v70
    %v73 = vpop.xlane.xlu0 %72
    %74 = vadd.xlane.f32.xlu0 %v71
    %v75 = vpop.xlane.xlu0 %74
    %v76 = vsub.f32 %v68, %v73
    %v77 = vsub.f32 %v69, %v75
    %v80 = vlaneseq
    %v81 = vand.u32 %v80, 127
    %v82 = vlaneseq
    %v83 = vshrl.u32 %v82, 7
    %v84 = vsub.s32 %v81, %v83
    %v85 = vrot.slane %v76, %v84
    %v86 = vadd.s32 %v81, 4294967288
    %v87 = vlaneseq
    %v88 = vshrl.u32 %v87, 7
    %v89 = vsub.s32 %v86, %v88
    %v90 = vrot.slane %v77, %v89
    %vm91 = vcmask 130112
    %v92 = vsel %vm91, %v90, %v85
    %vm94 = vcmask 122880
    %95 = vst.msk [vmem:[#allocation7] sm:$0x1] %vm94, %v92
    // Predicated region
    $region18: #{tpu_custom_call.1} parent=1 // pred_check
      _
    $region19: #{tpu_custom_call.1} parent=1 // pred_check_branch
      %97 = sbr.rel (0) target = $region21
    $region20: #{tpu_custom_call.1} parent=1 // pred_region
      %s99 = ssub.s32 16, 16
      %100 = vsyncadd [#allocation4], %s99
      %s102 = sshll.u32 [#allocation7], 4
      %s103 = int_to_ptr.vmem [resolvable:$true] %s102
      %105 = dma.vmem_to_hbm [thread:$0]  %s103, 16, %s2, [#allocation4]
    $region21: #{tpu_custom_call.1} parent=1 // pred_fallthru
      _
    // Predicated region
    $region22: #{tpu_custom_call.1} parent=1 // pred_check
      _
    $region23: #{tpu_custom_call.1} parent=1 // pred_check_branch
      %107 = sbr.rel (0) target = $region25
    $region24: #{tpu_custom_call.1} parent=1 // pred_region
      %108 = dma.done [#allocation4], 16
    $region25: #{tpu_custom_call.1} parent=1 // pred_fallthru
      _
    %109 = vsyncpa [#allocation3], 1
    %110 = vsyncpa [#allocation6], 1
    %111 = vsyncpa [#allocation4], 1

</llo_original>
